<compile_context>
chip_gen: v7x
topology: tpu7x:2x2x1
jax: 0.10.0
libtpu: 0.0.40
codegen_flags: <defaults>
</compile_context>

<pallas_src>
import functools

import jax
import jax.numpy as jnp
from jax import lax
from jax.experimental import pallas as pl
from jax.experimental.pallas import tpu as pltpu


def _bn_relu_kernel(x_ref, p_ref, o_ref, *, eps, inv_l):
    # x_ref: (C, L)  full slab, L = N*H*W
    # p_ref: (C, 2)  packed params: column 0 = gamma, column 1 = beta
    # o_ref: (C, L)
    x = x_ref[...].astype(jnp.float32)

    # Single-pass training-mode batch statistics per channel (biased variance).
    s1 = jnp.sum(x, axis=-1, keepdims=True)          # (C, 1)
    s2 = jnp.sum(x * x, axis=-1, keepdims=True)      # (C, 1)
    mean = s1 * inv_l
    var = jnp.maximum(s2 * inv_l - mean * mean, 0.0)  # clamp tiny negatives
    inv_std = lax.rsqrt(var + eps)                    # EUP slot

    gamma = p_ref[:, 0:1].astype(jnp.float32)         # (C, 1)
    beta = p_ref[:, 1:2].astype(jnp.float32)          # (C, 1)

    # Fold normalization into a single per-channel affine: y = x*scale + bias
    scale = inv_std * gamma                           # (C, 1)
    bias = beta - mean * scale                        # (C, 1)

    y = jnp.maximum(x * scale + bias, 0.0)            # BN + ReLU
    o_ref[...] = y.astype(o_ref.dtype)


def batchnorm_relu(x_nchw, gamma, beta, *, eps=1e-3):
    """BatchNorm2d (training-mode batch stats, affine) + ReLU on NCHW input."""
    n, c, h, w = x_nchw.shape
    l = n * h * w

    if n == 1:
        # Contiguous, layout-preserving reshape -- no data movement.
        x_cl = x_nchw.reshape(c, l)
    else:
        # General N genuinely needs a transpose to put all non-channel
        # elements on the per-channel reduction axis.
        x_cl = jnp.transpose(x_nchw, (1, 0, 2, 3)).reshape(c, l)

    # Pack gamma/beta into one (C, 2) array -> single parameter DMA.
    params = jnp.stack(
        [gamma.astype(jnp.float32), beta.astype(jnp.float32)], axis=-1
    )  # (C, 2)

    # Advisory cost hint: this custom call is tiny; let XLA schedule around it.
    elem_bytes = jnp.dtype(x_nchw.dtype).itemsize
    cost = pl.CostEstimate(
        flops=5 * c * l,
        transcendentals=c,
        bytes_accessed=2 * c * l * elem_bytes + 2 * c * 4,
    )

    vmem_spec = pl.BlockSpec(memory_space=pltpu.MemorySpace.VMEM)
    out_cl = pl.pallas_call(
        functools.partial(_bn_relu_kernel, eps=eps, inv_l=1.0 / float(l)),
        out_shape=jax.ShapeDtypeStruct((c, l), x_nchw.dtype),
        in_specs=[vmem_spec, vmem_spec],
        out_specs=vmem_spec,
        cost_estimate=cost,
    )(x_cl, params)

    if n == 1:
        return out_cl.reshape(n, c, h, w)   # free reshape back to NCHW
    return jnp.transpose(out_cl.reshape(c, n, h, w), (1, 0, 2, 3))


def _reference(x_nchw, gamma, beta, eps=1e-3):
    # Pure-JAX reference of training-mode BatchNorm2d + ReLU.
    mean = jnp.mean(x_nchw, axis=(0, 2, 3), keepdims=True)
    var = jnp.var(x_nchw, axis=(0, 2, 3), keepdims=True)  # biased
    y = (x_nchw - mean) / jnp.sqrt(var + eps)
    y = y * gamma.reshape(1, -1, 1, 1) + beta.reshape(1, -1, 1, 1)
    return jnp.maximum(y, 0.0)


if __name__ == "__main__":
    key = jax.random.PRNGKey(0)
    N, C, H, W = 1, 384, 5, 5  # matches the PyTorch module's input x315
    kx, kg, kb = jax.random.split(key, 3)

    x = jax.random.normal(kx, (N, C, H, W), dtype=jnp.float32)
    # Non-trivial affine params (stronger check than PyTorch's default 1/0 init).
    gamma = 1.0 + 0.1 * jax.random.normal(kg, (C,), dtype=jnp.float32)
    beta = 0.1 * jax.random.normal(kb, (C,), dtype=jnp.float32)

    out = batchnorm_relu(x, gamma, beta, eps=1e-3)
    out = jax.block_until_ready(out)

    ref = _reference(x, gamma, beta, eps=1e-3)
    assert out.shape == (N, C, H, W)
    assert jnp.allclose(out, ref, atol=1e-4, rtol=1e-4), "mismatch vs reference"

    print("KERNEL_OK")
</pallas_src>

<mosaic_0001>
module attributes {stable_mosaic.version = 11 : i64} {
  func.func @_bn_relu_kernel(%arg0: memref<384x25xf32, #tpu.memory_space<vmem>>, %arg1: memref<384x2xf32, #tpu.memory_space<vmem>>, %arg2: memref<384x25xf32, #tpu.memory_space<vmem>>) attributes {dimension_semantics = [], scalar_prefetch = 0 : i64, scratch_operands = 0 : i64, tpu.core_type = #tpu.core_type<tc>} {
    %c0 = arith.constant 0 : index
    %c0_0 = arith.constant 0 : index
    %0 = vector.load %arg0[%c0, %c0_0] : memref<384x25xf32, #tpu.memory_space<vmem>>, vector<384x25xf32>
    %cst = arith.constant dense<0.000000e+00> : vector<384xf32>
    %1 = vector.multi_reduction <add>, %0, %cst [1] : vector<384x25xf32> to vector<384xf32>
    %2 = vector.shape_cast %1 : vector<384xf32> to vector<384x1xf32>
    %3 = arith.mulf %0, %0 : vector<384x25xf32>
    %cst_1 = arith.constant dense<0.000000e+00> : vector<384xf32>
    %4 = vector.multi_reduction <add>, %3, %cst_1 [1] : vector<384x25xf32> to vector<384xf32>
    %5 = vector.shape_cast %4 : vector<384xf32> to vector<384x1xf32>
    %cst_2 = arith.constant 4.000000e-02 : f32
    %6 = vector.broadcast %cst_2 : f32 to vector<384x1xf32>
    %7 = arith.mulf %2, %6 : vector<384x1xf32>
    %cst_3 = arith.constant 4.000000e-02 : f32
    %8 = vector.broadcast %cst_3 : f32 to vector<384x1xf32>
    %9 = arith.mulf %5, %8 : vector<384x1xf32>
    %10 = arith.mulf %7, %7 : vector<384x1xf32>
    %11 = arith.subf %9, %10 : vector<384x1xf32>
    %cst_4 = arith.constant 0.000000e+00 : f32
    %12 = vector.broadcast %cst_4 : f32 to vector<384x1xf32>
    %13 = arith.maximumf %11, %12 : vector<384x1xf32>
    %cst_5 = arith.constant 1.000000e-03 : f32
    %14 = vector.broadcast %cst_5 : f32 to vector<384x1xf32>
    %15 = arith.addf %13, %14 : vector<384x1xf32>
    %16 = math.rsqrt %15 : vector<384x1xf32>
    %c0_6 = arith.constant 0 : index
    %c0_7 = arith.constant 0 : index
    %17 = vector.load %arg1[%c0_6, %c0_7] : memref<384x2xf32, #tpu.memory_space<vmem>>, vector<384x1xf32>
    %c0_8 = arith.constant 0 : index
    %c1 = arith.constant 1 : index
    %18 = vector.load %arg1[%c0_8, %c1] : memref<384x2xf32, #tpu.memory_space<vmem>>, vector<384x1xf32>
    %19 = arith.mulf %16, %17 : vector<384x1xf32>
    %20 = arith.mulf %7, %19 : vector<384x1xf32>
    %21 = arith.subf %18, %20 : vector<384x1xf32>
    %22 = vector.broadcast %19 : vector<384x1xf32> to vector<384x25xf32>
    %23 = arith.mulf %0, %22 : vector<384x25xf32>
    %24 = vector.broadcast %21 : vector<384x1xf32> to vector<384x25xf32>
    %25 = arith.addf %23, %24 : vector<384x25xf32>
    %cst_9 = arith.constant 0.000000e+00 : f32
    %26 = vector.broadcast %cst_9 : f32 to vector<384x25xf32>
    %27 = arith.maximumf %25, %26 : vector<384x25xf32>
    %c0_10 = arith.constant 0 : index
    %c0_11 = arith.constant 0 : index
    %28 = vector.load %arg2[%c0_10, %c0_11] : memref<384x25xf32, #tpu.memory_space<vmem>>, vector<384x25xf32>
    tpu.vector_store %arg2[%c0_10, %c0_11], %27 {strides = array<i32>} : memref<384x25xf32, #tpu.memory_space<vmem>>, vector<384x25xf32>,
    return
  }
}

</mosaic_0001>

<llo_original>
// kernel: tpu_custom_call.1
$region0: #{tpu_custom_call.1}
  #allocation0 [shape = 'u32[]', space=smem, size = 0x4, offset = 0x4, fixed_abs, tag = 'smem constant byte address 0x4 - core index']
  #allocation1 [shape = 'u32[144,128]{1,0:T(1,128)}', space=vmem, size = 0x12000, scoped, tag = 'internal scratch']
  %s0 = inlined_call_operand.vmem [shape: f32[384,25], index: 0, kind: input, shape index: {}]
  %s1 = inlined_call_operand.vmem [shape: f32[384,2], index: 1, kind: input, shape index: {}]
  %s2 = inlined_call_operand.vmem [shape: f32[384,25], index: 2, kind: output, shape index: {}]
  %s3 = sld [smem:[#allocation0]]
  $region18: #{tpu_custom_call.1} parent=0
    _
  %s5 = ssub.s32 1, %s3
  %s6 = scalar_select 0, %s5, %s3
  // Predicated region
  $region2: #{tpu_custom_call.1} parent=0 // pred_check
    _
  $region3: #{tpu_custom_call.1} parent=0 // pred_check_branch
    %8 = sbr.rel (0) target = $region5
  $region4: #{tpu_custom_call.1} parent=0 // pred_region
    _
  $region5: #{tpu_custom_call.1} parent=0 // pred_fallthru
    _
  // Predicated region
  $region6: #{tpu_custom_call.1} parent=0 // pred_check
    _
  $region7: #{tpu_custom_call.1} parent=0 // pred_check_branch
    %10 = sbr.rel (0) target = $region9
  $region8: #{tpu_custom_call.1} parent=0 // pred_region
    _
  $region9: #{tpu_custom_call.1} parent=0 // pred_fallthru
    _
  %v11 = vld [vmem:[%s0] sm:$0xff]
  %v12 = vld [vmem:[%s0 + $0x8] sm:$0xff]
  %v13 = vld [vmem:[%s0 + $0x10] sm:$0xff]
  %v14 = vld [vmem:[%s0 + $0x18] sm:$0xff]
  %v15 = vld [vmem:[%s0 + $0x20] sm:$0xff]
  %v16 = vld [vmem:[%s0 + $0x28] sm:$0xff]
  %v17 = vld [vmem:[%s0 + $0x30] sm:$0xff]
  %v18 = vld [vmem:[%s0 + $0x38] sm:$0xff]
  %v19 = vld [vmem:[%s0 + $0x40] sm:$0xff]
  %v20 = vld [vmem:[%s0 + $0x48] sm:$0xff]
  %v21 = vld [vmem:[%s0 + $0x50] sm:$0xff]
  %v22 = vld [vmem:[%s0 + $0x58] sm:$0xff]
  %v23 = vld [vmem:[%s0 + $0x60] sm:$0xff]
  %v24 = vld [vmem:[%s0 + $0x68] sm:$0xff]
  %v25 = vld [vmem:[%s0 + $0x70] sm:$0xff]
  %v26 = vld [vmem:[%s0 + $0x78] sm:$0xff]
  %v27 = vld [vmem:[%s0 + $0x80] sm:$0xff]
  %v28 = vld [vmem:[%s0 + $0x88] sm:$0xff]
  %v29 = vld [vmem:[%s0 + $0x90] sm:$0xff]
  %v30 = vld [vmem:[%s0 + $0x98] sm:$0xff]
  %v31 = vld [vmem:[%s0 + $0xa0] sm:$0xff]
  %v32 = vld [vmem:[%s0 + $0xa8] sm:$0xff]
  %v33 = vld [vmem:[%s0 + $0xb0] sm:$0xff]
  %v34 = vld [vmem:[%s0 + $0xb8] sm:$0xff]
  %v35 = vld [vmem:[%s0 + $0xc0] sm:$0xff]
  %v36 = vld [vmem:[%s0 + $0xc8] sm:$0xff]
  %v37 = vld [vmem:[%s0 + $0xd0] sm:$0xff]
  %v38 = vld [vmem:[%s0 + $0xd8] sm:$0xff]
  %v39 = vld [vmem:[%s0 + $0xe0] sm:$0xff]
  %v40 = vld [vmem:[%s0 + $0xe8] sm:$0xff]
  %v41 = vld [vmem:[%s0 + $0xf0] sm:$0xff]
  %v42 = vld [vmem:[%s0 + $0xf8] sm:$0xff]
  %v43 = vld [vmem:[%s0 + $0x100] sm:$0xff]
  %v44 = vld [vmem:[%s0 + $0x108] sm:$0xff]
  %v45 = vld [vmem:[%s0 + $0x110] sm:$0xff]
  %v46 = vld [vmem:[%s0 + $0x118] sm:$0xff]
  %v47 = vld [vmem:[%s0 + $0x120] sm:$0xff]
  %v48 = vld [vmem:[%s0 + $0x128] sm:$0xff]
  %v49 = vld [vmem:[%s0 + $0x130] sm:$0xff]
  %v50 = vld [vmem:[%s0 + $0x138] sm:$0xff]
  %v51 = vld [vmem:[%s0 + $0x140] sm:$0xff]
  %v52 = vld [vmem:[%s0 + $0x148] sm:$0xff]
  %v53 = vld [vmem:[%s0 + $0x150] sm:$0xff]
  %v54 = vld [vmem:[%s0 + $0x158] sm:$0xff]
  %v55 = vld [vmem:[%s0 + $0x160] sm:$0xff]
  %v56 = vld [vmem:[%s0 + $0x168] sm:$0xff]
  %v57 = vld [vmem:[%s0 + $0x170] sm:$0xff]
  %v58 = vld [vmem:[%s0 + $0x178] sm:$0xff]
  %vm59 = vcmask 203776
  %v60 = vsel %vm59, %v11, 0.0
  %61 = vadd.xlane.f32.xlu0 %v60
  %v62 = vpop.xlane.xlu0 %61
  %v63 = vsel %vm59, %v12, 0.0
  %64 = vadd.xlane.f32.xlu0 %v63
  %v65 = vpop.xlane.xlu0 %64
  %v66 = vsel %vm59, %v13, 0.0
  %67 = vadd.xlane.f32.xlu0 %v66
  %v68 = vpop.xlane.xlu0 %67
  %v69 = vsel %vm59, %v14, 0.0
  %70 = vadd.xlane.f32.xlu0 %v69
  %v71 = vpop.xlane.xlu0 %70
  %v72 = vsel %vm59, %v15, 0.0
  %73 = vadd.xlane.f32.xlu0 %v72
  %v74 = vpop.xlane.xlu0 %73
  %v75 = vsel %vm59, %v16, 0.0
  %76 = vadd.xlane.f32.xlu0 %v75
  %v77 = vpop.xlane.xlu0 %76
  %v78 = vsel %vm59, %v17, 0.0
  %79 = vadd.xlane.f32.xlu0 %v78
  %v80 = vpop.xlane.xlu0 %79
  %v81 = vsel %vm59, %v18, 0.0
  %82 = vadd.xlane.f32.xlu0 %v81
  %v83 = vpop.xlane.xlu0 %82
  %v84 = vsel %vm59, %v19, 0.0
  %85 = vadd.xlane.f32.xlu0 %v84
  %v86 = vpop.xlane.xlu0 %85
  %v87 = vsel %vm59, %v20, 0.0
  %88 = vadd.xlane.f32.xlu0 %v87
  %v89 = vpop.xlane.xlu0 %88
  %v90 = vsel %vm59, %v21, 0.0
  %91 = vadd.xlane.f32.xlu0 %v90
  %v92 = vpop.xlane.xlu0 %91
  %v93 = vsel %vm59, %v22, 0.0
  %94 = vadd.xlane.f32.xlu0 %v93
  %v95 = vpop.xlane.xlu0 %94
  %v96 = vsel %vm59, %v23, 0.0
  %97 = vadd.xlane.f32.xlu0 %v96
  %v98 = vpop.xlane.xlu0 %97
  %v99 = vsel %vm59, %v24, 0.0
  %100 = vadd.xlane.f32.xlu0 %v99
  %v101 = vpop.xlane.xlu0 %100
  %v102 = vsel %vm59, %v25, 0.0
  %103 = vadd.xlane.f32.xlu0 %v102
  %v104 = vpop.xlane.xlu0 %103
  %v105 = vsel %vm59, %v26, 0.0
  %106 = vadd.xlane.f32.xlu0 %v105
  %v107 = vpop.xlane.xlu0 %106
  %v108 = vsel %vm59, %v27, 0.0
  %109 = vadd.xlane.f32.xlu0 %v108
  %v110 = vpop.xlane.xlu0 %109
  %v111 = vsel %vm59, %v28, 0.0
  %112 = vadd.xlane.f32.xlu0 %v111
  %v113 = vpop.xlane.xlu0 %112
  %v114 = vsel %vm59, %v29, 0.0
  %115 = vadd.xlane.f32.xlu0 %v114
  %v116 = vpop.xlane.xlu0 %115
  %v117 = vsel %vm59, %v30, 0.0
  %118 = vadd.xlane.f32.xlu0 %v117
  %v119 = vpop.xlane.xlu0 %118
  %v120 = vsel %vm59, %v31, 0.0
  %121 = vadd.xlane.f32.xlu0 %v120
  %v122 = vpop.xlane.xlu0 %121
  %v123 = vsel %vm59, %v32, 0.0
  %124 = vadd.xlane.f32.xlu0 %v123
  %v125 = vpop.xlane.xlu0 %124
  %v126 = vsel %vm59, %v33, 0.0
  %127 = vadd.xlane.f32.xlu0 %v126
  %v128 = vpop.xlane.xlu0 %127
  %v129 = vsel %vm59, %v34, 0.0
  %130 = vadd.xlane.f32.xlu0 %v129
  %v131 = vpop.xlane.xlu0 %130
  %v132 = vsel %vm59, %v35, 0.0
  %133 = vadd.xlane.f32.xlu0 %v132
  %v134 = vpop.xlane.xlu0 %133
  %v135 = vsel %vm59, %v36, 0.0
  %136 = vadd.xlane.f32.xlu0 %v135
  %v137 = vpop.xlane.xlu0 %136
  %v138 = vsel %vm59, %v37, 0.0
  %139 = vadd.xlane.f32.xlu0 %v138
  %v140 = vpop.xlane.xlu0 %139
  %v141 = vsel %vm59, %v38, 0.0
  %142 = vadd.xlane.f32.xlu0 %v141
  %v143 = vpop.xlane.xlu0 %142
  %v144 = vsel %vm59, %v39, 0.0
  %145 = vadd.xlane.f32.xlu0 %v144
  %v146 = vpop.xlane.xlu0 %145
  %v147 = vsel %vm59, %v40, 0.0
  %148 = vadd.xlane.f32.xlu0 %v147
  %v149 = vpop.xlane.xlu0 %148
  %v150 = vsel %vm59, %v41, 0.0
  %151 = vadd.xlane.f32.xlu0 %v150
  %v152 = vpop.xlane.xlu0 %151
  %v153 = vsel %vm59, %v42, 0.0
  %154 = vadd.xlane.f32.xlu0 %v153
  %v155 = vpop.xlane.xlu0 %154
  %v156 = vsel %vm59, %v43, 0.0
  %157 = vadd.xlane.f32.xlu0 %v156
  %v158 = vpop.xlane.xlu0 %157
  %v159 = vsel %vm59, %v44, 0.0
  %160 = vadd.xlane.f32.xlu0 %v159
  %v161 = vpop.xlane.xlu0 %160
  %v162 = vsel %vm59, %v45, 0.0
  %163 = vadd.xlane.f32.xlu0 %v162
  %v164 = vpop.xlane.xlu0 %163
  %v165 = vsel %vm59, %v46, 0.0
  %166 = vadd.xlane.f32.xlu0 %v165
  %v167 = vpop.xlane.xlu0 %166
  %v168 = vsel %vm59, %v47, 0.0
  %169 = vadd.xlane.f32.xlu0 %v168
  %v170 = vpop.xlane.xlu0 %169
  %v171 = vsel %vm59, %v48, 0.0
  %172 = vadd.xlane.f32.xlu0 %v171
  %v173 = vpop.xlane.xlu0 %172
  %v174 = vsel %vm59, %v49, 0.0
  %175 = vadd.xlane.f32.xlu0 %v174
  %v176 = vpop.xlane.xlu0 %175
  %v177 = vsel %vm59, %v50, 0.0
  %178 = vadd.xlane.f32.xlu0 %v177
  %v179 = vpop.xlane.xlu0 %178
  %v180 = vsel %vm59, %v51, 0.0
  %181 = vadd.xlane.f32.xlu0 %v180
  %v182 = vpop.xlane.xlu0 %181
  %v183 = vsel %vm59, %v52, 0.0
  %184 = vadd.xlane.f32.xlu0 %v183
  %v185 = vpop.xlane.xlu0 %184
  %v186 = vsel %vm59, %v53, 0.0
  %187 = vadd.xlane.f32.xlu0 %v186
  %v188 = vpop.xlane.xlu0 %187
  %v189 = vsel %vm59, %v54, 0.0
  %190 = vadd.xlane.f32.xlu0 %v189
  %v191 = vpop.xlane.xlu0 %190
  %v192 = vsel %vm59, %v55, 0.0
  %193 = vadd.xlane.f32.xlu0 %v192
  %v194 = vpop.xlane.xlu0 %193
  %v195 = vsel %vm59, %v56, 0.0
  %196 = vadd.xlane.f32.xlu0 %v195
  %v197 = vpop.xlane.xlu0 %196
  %v198 = vsel %vm59, %v57, 0.0
  %199 = vadd.xlane.f32.xlu0 %v198
  %v200 = vpop.xlane.xlu0 %199
  %v201 = vsel %vm59, %v58, 0.0
  %202 = vadd.xlane.f32.xlu0 %v201
  %v203 = vpop.xlane.xlu0 %202
  %v204 = vmul.f32 %v11, %v11
  %v205 = vmul.f32 %v12, %v12
  %v206 = vmul.f32 %v13, %v13
  %v207 = vmul.f32 %v14, %v14
  %v208 = vmul.f32 %v15, %v15
  %v209 = vmul.f32 %v16, %v16
  %v210 = vmul.f32 %v17, %v17
  %v211 = vmul.f32 %v18, %v18
  %v212 = vmul.f32 %v19, %v19
  %v213 = vmul.f32 %v20, %v20
  %v214 = vmul.f32 %v21, %v21
  %v215 = vmul.f32 %v22, %v22
  %v216 = vmul.f32 %v23, %v23
  %v217 = vmul.f32 %v24, %v24
  %v218 = vmul.f32 %v25, %v25
  %v219 = vmul.f32 %v26, %v26
  %v220 = vmul.f32 %v27, %v27
  %v221 = vmul.f32 %v28, %v28
  %v222 = vmul.f32 %v29, %v29
  %v223 = vmul.f32 %v30, %v30
  %v224 = vmul.f32 %v31, %v31
  %v225 = vmul.f32 %v32, %v32
  %v226 = vmul.f32 %v33, %v33
  %v227 = vmul.f32 %v34, %v34
  %v228 = vmul.f32 %v35, %v35
  %v229 = vmul.f32 %v36, %v36
  %v230 = vmul.f32 %v37, %v37
  %v231 = vmul.f32 %v38, %v38
  %v232 = vmul.f32 %v39, %v39
  %v233 = vmul.f32 %v40, %v40
  %v234 = vmul.f32 %v41, %v41
  %v235 = vmul.f32 %v42, %v42
  %v236 = vmul.f32 %v43, %v43
  %v237 = vmul.f32 %v44, %v44
  %v238 = vmul.f32 %v45, %v45
  %v239 = vmul.f32 %v46, %v46
  %v240 = vmul.f32 %v47, %v47
  %v241 = vmul.f32 %v48, %v48
  %v242 = vmul.f32 %v49, %v49
  %v243 = vmul.f32 %v50, %v50
  %v244 = vmul.f32 %v51, %v51
  %v245 = vmul.f32 %v52, %v52
  %v246 = vmul.f32 %v53, %v53
  %v247 = vmul.f32 %v54, %v54
  %v248 = vmul.f32 %v55, %v55
  %v249 = vmul.f32 %v56, %v56
  %v250 = vmul.f32 %v57, %v57
  %v251 = vmul.f32 %v58, %v58
  %v252 = vsel %vm59, %v204, 0.0
  %253 = vadd.xlane.f32.xlu0 %v252
  %v254 = vpop.xlane.xlu0 %253
  %v255 = vsel %vm59, %v205, 0.0
  %256 = vadd.xlane.f32.xlu0 %v255
  %v257 = vpop.xlane.xlu0 %256
  %v258 = vsel %vm59, %v206, 0.0
  %259 = vadd.xlane.f32.xlu0 %v258
  %v260 = vpop.xlane.xlu0 %259
  %v261 = vsel %vm59, %v207, 0.0
  %262 = vadd.xlane.f32.xlu0 %v261
  %v263 = vpop.xlane.xlu0 %262
  %v264 = vsel %vm59, %v208, 0.0
  %265 = vadd.xlane.f32.xlu0 %v264
  %v266 = vpop.xlane.xlu0 %265
  %v267 = vsel %vm59, %v209, 0.0
  %268 = vadd.xlane.f32.xlu0 %v267
  %v269 = vpop.xlane.xlu0 %268
  %v270 = vsel %vm59, %v210, 0.0
  %271 = vadd.xlane.f32.xlu0 %v270
  %v272 = vpop.xlane.xlu0 %271
  %v273 = vsel %vm59, %v211, 0.0
  %274 = vadd.xlane.f32.xlu0 %v273
  %v275 = vpop.xlane.xlu0 %274
  %v276 = vsel %vm59, %v212, 0.0
  %277 = vadd.xlane.f32.xlu0 %v276
  %v278 = vpop.xlane.xlu0 %277
  %v279 = vsel %vm59, %v213, 0.0
  %280 = vadd.xlane.f32.xlu0 %v279
  %v281 = vpop.xlane.xlu0 %280
  %v282 = vsel %vm59, %v214, 0.0
  %283 = vadd.xlane.f32.xlu0 %v282
  %v284 = vpop.xlane.xlu0 %283
  %v285 = vsel %vm59, %v215, 0.0
  %286 = vadd.xlane.f32.xlu0 %v285
  %v287 = vpop.xlane.xlu0 %286
  %v288 = vsel %vm59, %v216, 0.0
  %289 = vadd.xlane.f32.xlu0 %v288
  %v290 = vpop.xlane.xlu0 %289
  %v291 = vsel %vm59, %v217, 0.0
  %292 = vadd.xlane.f32.xlu0 %v291
  %v293 = vpop.xlane.xlu0 %292
  %v294 = vsel %vm59, %v218, 0.0
  %295 = vadd.xlane.f32.xlu0 %v294
  %v296 = vpop.xlane.xlu0 %295
  %v297 = vsel %vm59, %v219, 0.0
  %298 = vadd.xlane.f32.xlu0 %v297
  %v299 = vpop.xlane.xlu0 %298
  %v300 = vsel %vm59, %v220, 0.0
  %301 = vadd.xlane.f32.xlu0 %v300
  %v302 = vpop.xlane.xlu0 %301
  %v303 = vsel %vm59, %v221, 0.0
  %304 = vadd.xlane.f32.xlu0 %v303
  %v305 = vpop.xlane.xlu0 %304
  %v306 = vsel %vm59, %v222, 0.0
  %307 = vadd.xlane.f32.xlu0 %v306
  %v308 = vpop.xlane.xlu0 %307
  %v309 = vsel %vm59, %v223, 0.0
  %310 = vadd.xlane.f32.xlu0 %v309
  %v311 = vpop.xlane.xlu0 %310
  %v312 = vsel %vm59, %v224, 0.0
  %313 = vadd.xlane.f32.xlu0 %v312
  %v314 = vpop.xlane.xlu0 %313
  %v315 = vsel %vm59, %v225, 0.0
  %316 = vadd.xlane.f32.xlu0 %v315
  %v317 = vpop.xlane.xlu0 %316
  %v318 = vsel %vm59, %v226, 0.0
  %319 = vadd.xlane.f32.xlu0 %v318
  %v320 = vpop.xlane.xlu0 %319
  %v321 = vsel %vm59, %v227, 0.0
  %322 = vadd.xlane.f32.xlu0 %v321
  %v323 = vpop.xlane.xlu0 %322
  %v324 = vsel %vm59, %v228, 0.0
  %325 = vadd.xlane.f32.xlu0 %v324
  %v326 = vpop.xlane.xlu0 %325
  %v327 = vsel %vm59, %v229, 0.0
  %328 = vadd.xlane.f32.xlu0 %v327
  %v329 = vpop.xlane.xlu0 %328
  %v330 = vsel %vm59, %v230, 0.0
  %331 = vadd.xlane.f32.xlu0 %v330
  %v332 = vpop.xlane.xlu0 %331
  %v333 = vsel %vm59, %v231, 0.0
  %334 = vadd.xlane.f32.xlu0 %v333
  %v335 = vpop.xlane.xlu0 %334
  %v336 = vsel %vm59, %v232, 0.0
  %337 = vadd.xlane.f32.xlu0 %v336
  %v338 = vpop.xlane.xlu0 %337
  %v339 = vsel %vm59, %v233, 0.0
  %340 = vadd.xlane.f32.xlu0 %v339
  %v341 = vpop.xlane.xlu0 %340
  %v342 = vsel %vm59, %v234, 0.0
  %343 = vadd.xlane.f32.xlu0 %v342
  %v344 = vpop.xlane.xlu0 %343
  %v345 = vsel %vm59, %v235, 0.0
  %346 = vadd.xlane.f32.xlu0 %v345
  %v347 = vpop.xlane.xlu0 %346
  %v348 = vsel %vm59, %v236, 0.0
  %349 = vadd.xlane.f32.xlu0 %v348
  %v350 = vpop.xlane.xlu0 %349
  %v351 = vsel %vm59, %v237, 0.0
  %352 = vadd.xlane.f32.xlu0 %v351
  %v353 = vpop.xlane.xlu0 %352
  %v354 = vsel %vm59, %v238, 0.0
  %355 = vadd.xlane.f32.xlu0 %v354
  %v356 = vpop.xlane.xlu0 %355
  %v357 = vsel %vm59, %v239, 0.0
  %358 = vadd.xlane.f32.xlu0 %v357
  %v359 = vpop.xlane.xlu0 %358
  %v360 = vsel %vm59, %v240, 0.0
  %361 = vadd.xlane.f32.xlu0 %v360
  %v362 = vpop.xlane.xlu0 %361
  %v363 = vsel %vm59, %v241, 0.0
  %364 = vadd.xlane.f32.xlu0 %v363
  %v365 = vpop.xlane.xlu0 %364
  %v366 = vsel %vm59, %v242, 0.0
  %367 = vadd.xlane.f32.xlu0 %v366
  %v368 = vpop.xlane.xlu0 %367
  %v369 = vsel %vm59, %v243, 0.0
  %370 = vadd.xlane.f32.xlu0 %v369
  %v371 = vpop.xlane.xlu0 %370
  %v372 = vsel %vm59, %v244, 0.0
  %373 = vadd.xlane.f32.xlu0 %v372
  %v374 = vpop.xlane.xlu0 %373
  %v375 = vsel %vm59, %v245, 0.0
  %376 = vadd.xlane.f32.xlu0 %v375
  %v377 = vpop.xlane.xlu0 %376
  %v378 = vsel %vm59, %v246, 0.0
  %379 = vadd.xlane.f32.xlu0 %v378
  %v380 = vpop.xlane.xlu0 %379
  %v381 = vsel %vm59, %v247, 0.0
  %382 = vadd.xlane.f32.xlu0 %v381
  %v383 = vpop.xlane.xlu0 %382
  %v384 = vsel %vm59, %v248, 0.0
  %385 = vadd.xlane.f32.xlu0 %v384
  %v386 = vpop.xlane.xlu0 %385
  %v387 = vsel %vm59, %v249, 0.0
  %388 = vadd.xlane.f32.xlu0 %v387
  %v389 = vpop.xlane.xlu0 %388
  %v390 = vsel %vm59, %v250, 0.0
  %391 = vadd.xlane.f32.xlu0 %v390
  %v392 = vpop.xlane.xlu0 %391
  %v393 = vsel %vm59, %v251, 0.0
  %394 = vadd.xlane.f32.xlu0 %v393
  %v395 = vpop.xlane.xlu0 %394
  %v396 = vmul.f32 %v62, 0.04
  %v397 = vmul.f32 %v65, 0.04
  %v398 = vmul.f32 %v68, 0.04
  %v399 = vmul.f32 %v71, 0.04
  %v400 = vmul.f32 %v74, 0.04
  %v401 = vmul.f32 %v77, 0.04
  %v402 = vmul.f32 %v80, 0.04
  %v403 = vmul.f32 %v83, 0.04
  %v404 = vmul.f32 %v86, 0.04
  %v405 = vmul.f32 %v89, 0.04
  %v406 = vmul.f32 %v92, 0.04
  %v407 = vmul.f32 %v95, 0.04
  %v408 = vmul.f32 %v98, 0.04
  %v409 = vmul.f32 %v101, 0.04
  %v410 = vmul.f32 %v104, 0.04
  %v411 = vmul.f32 %v107, 0.04
  %v412 = vmul.f32 %v110, 0.04
  %v413 = vmul.f32 %v113, 0.04
  %v414 = vmul.f32 %v116, 0.04
  %v415 = vmul.f32 %v119, 0.04
  %v416 = vmul.f32 %v122, 0.04
  %v417 = vmul.f32 %v125, 0.04
  %v418 = vmul.f32 %v128, 0.04
  %v419 = vmul.f32 %v131, 0.04
  %v420 = vmul.f32 %v134, 0.04
  %v421 = vmul.f32 %v137, 0.04
  %v422 = vmul.f32 %v140, 0.04
  %v423 = vmul.f32 %v143, 0.04
  %v424 = vmul.f32 %v146, 0.04
  %v425 = vmul.f32 %v149, 0.04
  %v426 = vmul.f32 %v152, 0.04
  %v427 = vmul.f32 %v155, 0.04
  %v428 = vmul.f32 %v158, 0.04
  %v429 = vmul.f32 %v161, 0.04
  %v430 = vmul.f32 %v164, 0.04
  %v431 = vmul.f32 %v167, 0.04
  %v432 = vmul.f32 %v170, 0.04
  %v433 = vmul.f32 %v173, 0.04
  %v434 = vmul.f32 %v176, 0.04
  %v435 = vmul.f32 %v179, 0.04
  %v436 = vmul.f32 %v182, 0.04
  %v437 = vmul.f32 %v185, 0.04
  %v438 = vmul.f32 %v188, 0.04
  %v439 = vmul.f32 %v191, 0.04
  %v440 = vmul.f32 %v194, 0.04
  %v441 = vmul.f32 %v197, 0.04
  %v442 = vmul.f32 %v200, 0.04
  %v443 = vmul.f32 %v203, 0.04
  %v444 = vmul.f32 %v254, 0.04
  %v445 = vmul.f32 %v257, 0.04
  %v446 = vmul.f32 %v260, 0.04
  %v447 = vmul.f32 %v263, 0.04
  %v448 = vmul.f32 %v266, 0.04
  %v449 = vmul.f32 %v269, 0.04
  %v450 = vmul.f32 %v272, 0.04
  %v451 = vmul.f32 %v275, 0.04
  %v452 = vmul.f32 %v278, 0.04
  %v453 = vmul.f32 %v281, 0.04
  %v454 = vmul.f32 %v284, 0.04
  %v455 = vmul.f32 %v287, 0.04
  %v456 = vmul.f32 %v290, 0.04
  %v457 = vmul.f32 %v293, 0.04
  %v458 = vmul.f32 %v296, 0.04
  %v459 = vmul.f32 %v299, 0.04
  %v460 = vmul.f32 %v302, 0.04
  %v461 = vmul.f32 %v305, 0.04
  %v462 = vmul.f32 %v308, 0.04
  %v463 = vmul.f32 %v311, 0.04
  %v464 = vmul.f32 %v314, 0.04
  %v465 = vmul.f32 %v317, 0.04
  %v466 = vmul.f32 %v320, 0.04
  %v467 = vmul.f32 %v323, 0.04
  %v468 = vmul.f32 %v326, 0.04
  %v469 = vmul.f32 %v329, 0.04
  %v470 = vmul.f32 %v332, 0.04
  %v471 = vmul.f32 %v335, 0.04
  %v472 = vmul.f32 %v338, 0.04
  %v473 = vmul.f32 %v341, 0.04
  %v474 = vmul.f32 %v344, 0.04
  %v475 = vmul.f32 %v347, 0.04
  %v476 = vmul.f32 %v350, 0.04
  %v477 = vmul.f32 %v353, 0.04
  %v478 = vmul.f32 %v356, 0.04
  %v479 = vmul.f32 %v359, 0.04
  %v480 = vmul.f32 %v362, 0.04
  %v481 = vmul.f32 %v365, 0.04
  %v482 = vmul.f32 %v368, 0.04
  %v483 = vmul.f32 %v371, 0.04
  %v484 = vmul.f32 %v374, 0.04
  %v485 = vmul.f32 %v377, 0.04
  %v486 = vmul.f32 %v380, 0.04
  %v487 = vmul.f32 %v383, 0.04
  %v488 = vmul.f32 %v386, 0.04
  %v489 = vmul.f32 %v389, 0.04
  %v490 = vmul.f32 %v392, 0.04
  %v491 = vmul.f32 %v395, 0.04
  %v492 = vmul.f32 %v396, %v396
  %v493 = vmul.f32 %v397, %v397
  %v494 = vmul.f32 %v398, %v398
  %v495 = vmul.f32 %v399, %v399
  %v496 = vmul.f32 %v400, %v400
  %v497 = vmul.f32 %v401, %v401
  %v498 = vmul.f32 %v402, %v402
  %v499 = vmul.f32 %v403, %v403
  %v500 = vmul.f32 %v404, %v404
  %v501 = vmul.f32 %v405, %v405
  %v502 = vmul.f32 %v406, %v406
  %v503 = vmul.f32 %v407, %v407
  %v504 = vmul.f32 %v408, %v408
  %v505 = vmul.f32 %v409, %v409
  %v506 = vmul.f32 %v410, %v410
  %v507 = vmul.f32 %v411, %v411
  %v508 = vmul.f32 %v412, %v412
  %v509 = vmul.f32 %v413, %v413
  %v510 = vmul.f32 %v414, %v414
  %v511 = vmul.f32 %v415, %v415
  %v512 = vmul.f32 %v416, %v416
  %v513 = vmul.f32 %v417, %v417
  %v514 = vmul.f32 %v418, %v418
  %v515 = vmul.f32 %v419, %v419
  %v516 = vmul.f32 %v420, %v420
  %v517 = vmul.f32 %v421, %v421
  %v518 = vmul.f32 %v422, %v422
  %v519 = vmul.f32 %v423, %v423
  %v520 = vmul.f32 %v424, %v424
  %v521 = vmul.f32 %v425, %v425
  %v522 = vmul.f32 %v426, %v426
  %v523 = vmul.f32 %v427, %v427
  %v524 = vmul.f32 %v428, %v428
  %v525 = vmul.f32 %v429, %v429
  %v526 = vmul.f32 %v430, %v430
  %v527 = vmul.f32 %v431, %v431
  %v528 = vmul.f32 %v432, %v432
  %v529 = vmul.f32 %v433, %v433
  %v530 = vmul.f32 %v434, %v434
  %v531 = vmul.f32 %v435, %v435
  %v532 = vmul.f32 %v436, %v436
  %v533 = vmul.f32 %v437, %v437
  %v534 = vmul.f32 %v438, %v438
  %v535 = vmul.f32 %v439, %v439
  %v536 = vmul.f32 %v440, %v440
  %v537 = vmul.f32 %v441, %v441
  %v538 = vmul.f32 %v442, %v442
  %v539 = vmul.f32 %v443, %v443
  %v540 = vsub.f32 %v444, %v492
  %v541 = vsub.f32 %v445, %v493
  %v542 = vsub.f32 %v446, %v494
  %v543 = vsub.f32 %v447, %v495
  %v544 = vsub.f32 %v448, %v496
  %v545 = vsub.f32 %v449, %v497
  %v546 = vsub.f32 %v450, %v498
  %v547 = vsub.f32 %v451, %v499
  %v548 = vsub.f32 %v452, %v500
  %v549 = vsub.f32 %v453, %v501
  %v550 = vsub.f32 %v454, %v502
  %v551 = vsub.f32 %v455, %v503
  %v552 = vsub.f32 %v456, %v504
  %v553 = vsub.f32 %v457, %v505
  %v554 = vsub.f32 %v458, %v506
  %v555 = vsub.f32 %v459, %v507
  %v556 = vsub.f32 %v460, %v508
  %v557 = vsub.f32 %v461, %v509
  %v558 = vsub.f32 %v462, %v510
  %v559 = vsub.f32 %v463, %v511
  %v560 = vsub.f32 %v464, %v512
  %v561 = vsub.f32 %v465, %v513
  %v562 = vsub.f32 %v466, %v514
  %v563 = vsub.f32 %v467, %v515
  %v564 = vsub.f32 %v468, %v516
  %v565 = vsub.f32 %v469, %v517
  %v566 = vsub.f32 %v470, %v518
  %v567 = vsub.f32 %v471, %v519
  %v568 = vsub.f32 %v472, %v520
  %v569 = vsub.f32 %v473, %v521
  %v570 = vsub.f32 %v474, %v522
  %v571 = vsub.f32 %v475, %v523
  %v572 = vsub.f32 %v476, %v524
  %v573 = vsub.f32 %v477, %v525
  %v574 = vsub.f32 %v478, %v526
  %v575 = vsub.f32 %v479, %v527
  %v576 = vsub.f32 %v480, %v528
  %v577 = vsub.f32 %v481, %v529
  %v578 = vsub.f32 %v482, %v530
  %v579 = vsub.f32 %v483, %v531
  %v580 = vsub.f32 %v484, %v532
  %v581 = vsub.f32 %v485, %v533
  %v582 = vsub.f32 %v486, %v534
  %v583 = vsub.f32 %v487, %v535
  %v584 = vsub.f32 %v488, %v536
  %v585 = vsub.f32 %v489, %v537
  %v586 = vsub.f32 %v490, %v538
  %v587 = vsub.f32 %v491, %v539
  %v588 = vmax.f32 %v540, 0.0
  %v589 = vmax.f32 %v541, 0.0
  %v590 = vmax.f32 %v542, 0.0
  %v591 = vmax.f32 %v543, 0.0
  %v592 = vmax.f32 %v544, 0.0
  %v593 = vmax.f32 %v545, 0.0
  %v594 = vmax.f32 %v546, 0.0
  %v595 = vmax.f32 %v547, 0.0
  %v596 = vmax.f32 %v548, 0.0
  %v597 = vmax.f32 %v549, 0.0
  %v598 = vmax.f32 %v550, 0.0
  %v599 = vmax.f32 %v551, 0.0
  %v600 = vmax.f32 %v552, 0.0
  %v601 = vmax.f32 %v553, 0.0
  %v602 = vmax.f32 %v554, 0.0
  %v603 = vmax.f32 %v555, 0.0
  %v604 = vmax.f32 %v556, 0.0
  %v605 = vmax.f32 %v557, 0.0
  %v606 = vmax.f32 %v558, 0.0
  %v607 = vmax.f32 %v559, 0.0
  %v608 = vmax.f32 %v560, 0.0
  %v609 = vmax.f32 %v561, 0.0
  %v610 = vmax.f32 %v562, 0.0
  %v611 = vmax.f32 %v563, 0.0
  %v612 = vmax.f32 %v564, 0.0
  %v613 = vmax.f32 %v565, 0.0
  %v614 = vmax.f32 %v566, 0.0
  %v615 = vmax.f32 %v567, 0.0
  %v616 = vmax.f32 %v568, 0.0
  %v617 = vmax.f32 %v569, 0.0
  %v618 = vmax.f32 %v570, 0.0
  %v619 = vmax.f32 %v571, 0.0
  %v620 = vmax.f32 %v572, 0.0
  %v621 = vmax.f32 %v573, 0.0
  %v622 = vmax.f32 %v574, 0.0
  %v623 = vmax.f32 %v575, 0.0
  %v624 = vmax.f32 %v576, 0.0
  %v625 = vmax.f32 %v577, 0.0
  %v626 = vmax.f32 %v578, 0.0
  %v627 = vmax.f32 %v579, 0.0
  %v628 = vmax.f32 %v580, 0.0
  %v629 = vmax.f32 %v581, 0.0
  %v630 = vmax.f32 %v582, 0.0
  %v631 = vmax.f32 %v583, 0.0
  %v632 = vmax.f32 %v584, 0.0
  %v633 = vmax.f32 %v585, 0.0
  %v634 = vmax.f32 %v586, 0.0
  %v635 = vmax.f32 %v587, 0.0
  %v636 = vadd.f32 %v588, 0.001
  %v637 = vadd.f32 %v589, 0.001
  %v638 = vadd.f32 %v590, 0.001
  %v639 = vadd.f32 %v591, 0.001
  %v640 = vadd.f32 %v592, 0.001
  %v641 = vadd.f32 %v593, 0.001
  %v642 = vadd.f32 %v594, 0.001
  %v643 = vadd.f32 %v595, 0.001
  %v644 = vadd.f32 %v596, 0.001
  %v645 = vadd.f32 %v597, 0.001
  %v646 = vadd.f32 %v598, 0.001
  %v647 = vadd.f32 %v599, 0.001
  %v648 = vadd.f32 %v600, 0.001
  %v649 = vadd.f32 %v601, 0.001
  %v650 = vadd.f32 %v602, 0.001
  %v651 = vadd.f32 %v603, 0.001
  %v652 = vadd.f32 %v604, 0.001
  %v653 = vadd.f32 %v605, 0.001
  %v654 = vadd.f32 %v606, 0.001
  %v655 = vadd.f32 %v607, 0.001
  %v656 = vadd.f32 %v608, 0.001
  %v657 = vadd.f32 %v609, 0.001
  %v658 = vadd.f32 %v610, 0.001
  %v659 = vadd.f32 %v611, 0.001
  %v660 = vadd.f32 %v612, 0.001
  %v661 = vadd.f32 %v613, 0.001
  %v662 = vadd.f32 %v614, 0.001
  %v663 = vadd.f32 %v615, 0.001
  %v664 = vadd.f32 %v616, 0.001
  %v665 = vadd.f32 %v617, 0.001
  %v666 = vadd.f32 %v618, 0.001
  %v667 = vadd.f32 %v619, 0.001
  %v668 = vadd.f32 %v620, 0.001
  %v669 = vadd.f32 %v621, 0.001
  %v670 = vadd.f32 %v622, 0.001
  %v671 = vadd.f32 %v623, 0.001
  %v672 = vadd.f32 %v624, 0.001
  %v673 = vadd.f32 %v625, 0.001
  %v674 = vadd.f32 %v626, 0.001
  %v675 = vadd.f32 %v627, 0.001
  %v676 = vadd.f32 %v628, 0.001
  %v677 = vadd.f32 %v629, 0.001
  %v678 = vadd.f32 %v630, 0.001
  %v679 = vadd.f32 %v631, 0.001
  %v680 = vadd.f32 %v632, 0.001
  %v681 = vadd.f32 %v633, 0.001
  %v682 = vadd.f32 %v634, 0.001
  %v683 = vadd.f32 %v635, 0.001
  %v684 = vrsqrt.pop %v636
  %v685 = vrsqrt.pop %v637
  %v686 = vrsqrt.pop %v638
  %v687 = vrsqrt.pop %v639
  %v688 = vrsqrt.pop %v640
  %v689 = vrsqrt.pop %v641
  %v690 = vrsqrt.pop %v642
  %v691 = vrsqrt.pop %v643
  %v692 = vrsqrt.pop %v644
  %v693 = vrsqrt.pop %v645
  %v694 = vrsqrt.pop %v646
  %v695 = vrsqrt.pop %v647
  %v696 = vrsqrt.pop %v648
  %v697 = vrsqrt.pop %v649
  %v698 = vrsqrt.pop %v650
  %v699 = vrsqrt.pop %v651
  %v700 = vrsqrt.pop %v652
  %v701 = vrsqrt.pop %v653
  %v702 = vrsqrt.pop %v654
  %v703 = vrsqrt.pop %v655
  %v704 = vrsqrt.pop %v656
  %v705 = vrsqrt.pop %v657
  %v706 = vrsqrt.pop %v658
  %v707 = vrsqrt.pop %v659
  %v708 = vrsqrt.pop %v660
  %v709 = vrsqrt.pop %v661
  %v710 = vrsqrt.pop %v662
  %v711 = vrsqrt.pop %v663
  %v712 = vrsqrt.pop %v664
  %v713 = vrsqrt.pop %v665
  %v714 = vrsqrt.pop %v666
  %v715 = vrsqrt.pop %v667
  %v716 = vrsqrt.pop %v668
  %v717 = vrsqrt.pop %v669
  %v718 = vrsqrt.pop %v670
  %v719 = vrsqrt.pop %v671
  %v720 = vrsqrt.pop %v672
  %v721 = vrsqrt.pop %v673
  %v722 = vrsqrt.pop %v674
  %v723 = vrsqrt.pop %v675
  %v724 = vrsqrt.pop %v676
  %v725 = vrsqrt.pop %v677
  %v726 = vrsqrt.pop %v678
  %v727 = vrsqrt.pop %v679
  %v728 = vrsqrt.pop %v680
  %v729 = vrsqrt.pop %v681
  %v730 = vrsqrt.pop %v682
  %v731 = vrsqrt.pop %v683
  %v732 = vld [vmem:[%s1] sm:$0xff]
  %v733 = vld [vmem:[%s1 + $0x8] sm:$0xff]
  %v734 = vld [vmem:[%s1 + $0x10] sm:$0xff]
  %v735 = vld [vmem:[%s1 + $0x18] sm:$0xff]
  %v736 = vld [vmem:[%s1 + $0x20] sm:$0xff]
  %v737 = vld [vmem:[%s1 + $0x28] sm:$0xff]
  %v738 = vld [vmem:[%s1 + $0x30] sm:$0xff]
  %v739 = vld [vmem:[%s1 + $0x38] sm:$0xff]
  %v740 = vld [vmem:[%s1 + $0x40] sm:$0xff]
  %v741 = vld [vmem:[%s1 + $0x48] sm:$0xff]
  %v742 = vld [vmem:[%s1 + $0x50] sm:$0xff]
  %v743 = vld [vmem:[%s1 + $0x58] sm:$0xff]
  %v744 = vld [vmem:[%s1 + $0x60] sm:$0xff]
  %v745 = vld [vmem:[%s1 + $0x68] sm:$0xff]
  %v746 = vld [vmem:[%s1 + $0x70] sm:$0xff]
  %v747 = vld [vmem:[%s1 + $0x78] sm:$0xff]
  %v748 = vld [vmem:[%s1 + $0x80] sm:$0xff]
  %v749 = vld [vmem:[%s1 + $0x88] sm:$0xff]
  %v750 = vld [vmem:[%s1 + $0x90] sm:$0xff]
  %v751 = vld [vmem:[%s1 + $0x98] sm:$0xff]
  %v752 = vld [vmem:[%s1 + $0xa0] sm:$0xff]
  %v753 = vld [vmem:[%s1 + $0xa8] sm:$0xff]
  %v754 = vld [vmem:[%s1 + $0xb0] sm:$0xff]
  %v755 = vld [vmem:[%s1 + $0xb8] sm:$0xff]
  %v756 = vld [vmem:[%s1 + $0xc0] sm:$0xff]
  %v757 = vld [vmem:[%s1 + $0xc8] sm:$0xff]
  %v758 = vld [vmem:[%s1 + $0xd0] sm:$0xff]
  %v759 = vld [vmem:[%s1 + $0xd8] sm:$0xff]
  %v760 = vld [vmem:[%s1 + $0xe0] sm:$0xff]
  %v761 = vld [vmem:[%s1 + $0xe8] sm:$0xff]
  %v762 = vld [vmem:[%s1 + $0xf0] sm:$0xff]
  %v763 = vld [vmem:[%s1 + $0xf8] sm:$0xff]
  %v764 = vld [vmem:[%s1 + $0x100] sm:$0xff]
  %v765 = vld [vmem:[%s1 + $0x108] sm:$0xff]
  %v766 = vld [vmem:[%s1 + $0x110] sm:$0xff]
  %v767 = vld [vmem:[%s1 + $0x118] sm:$0xff]
  %v768 = vld [vmem:[%s1 + $0x120] sm:$0xff]
  %v769 = vld [vmem:[%s1 + $0x128] sm:$0xff]
  %v770 = vld [vmem:[%s1 + $0x130] sm:$0xff]
  %v771 = vld [vmem:[%s1 + $0x138] sm:$0xff]
  %v772 = vld [vmem:[%s1 + $0x140] sm:$0xff]
  %v773 = vld [vmem:[%s1 + $0x148] sm:$0xff]
  %v774 = vld [vmem:[%s1 + $0x150] sm:$0xff]
  %v775 = vld [vmem:[%s1 + $0x158] sm:$0xff]
  %v776 = vld [vmem:[%s1 + $0x160] sm:$0xff]
  %v777 = vld [vmem:[%s1 + $0x168] sm:$0xff]
  %v778 = vld [vmem:[%s1 + $0x170] sm:$0xff]
  %v779 = vld [vmem:[%s1 + $0x178] sm:$0xff]
  %v780 = vmul.f32 %v684, %v732
  %v781 = vmul.f32 %v685, %v733
  %v782 = vmul.f32 %v686, %v734
  %v783 = vmul.f32 %v687, %v735
  %v784 = vmul.f32 %v688, %v736
  %v785 = vmul.f32 %v689, %v737
  %v786 = vmul.f32 %v690, %v738
  %v787 = vmul.f32 %v691, %v739
  %v788 = vmul.f32 %v692, %v740
  %v789 = vmul.f32 %v693, %v741
  %v790 = vmul.f32 %v694, %v742
  %v791 = vmul.f32 %v695, %v743
  %v792 = vmul.f32 %v696, %v744
  %v793 = vmul.f32 %v697, %v745
  %v794 = vmul.f32 %v698, %v746
  %v795 = vmul.f32 %v699, %v747
  %v796 = vmul.f32 %v700, %v748
  %v797 = vmul.f32 %v701, %v749
  %v798 = vmul.f32 %v702, %v750
  %v799 = vmul.f32 %v703, %v751
  %v800 = vmul.f32 %v704, %v752
  %v801 = vmul.f32 %v705, %v753
  %v802 = vmul.f32 %v706, %v754
  %v803 = vmul.f32 %v707, %v755
  %v804 = vmul.f32 %v708, %v756
  %v805 = vmul.f32 %v709, %v757
  %v806 = vmul.f32 %v710, %v758
  %v807 = vmul.f32 %v711, %v759
  %v808 = vmul.f32 %v712, %v760
  %v809 = vmul.f32 %v713, %v761
  %v810 = vmul.f32 %v714, %v762
  %v811 = vmul.f32 %v715, %v763
  %v812 = vmul.f32 %v716, %v764
  %v813 = vmul.f32 %v717, %v765
  %v814 = vmul.f32 %v718, %v766
  %v815 = vmul.f32 %v719, %v767
  %v816 = vmul.f32 %v720, %v768
  %v817 = vmul.f32 %v721, %v769
  %v818 = vmul.f32 %v722, %v770
  %v819 = vmul.f32 %v723, %v771
  %v820 = vmul.f32 %v724, %v772
  %v821 = vmul.f32 %v725, %v773
  %v822 = vmul.f32 %v726, %v774
  %v823 = vmul.f32 %v727, %v775
  %v824 = vmul.f32 %v728, %v776
  %v825 = vmul.f32 %v729, %v777
  %v826 = vmul.f32 %v730, %v778
  %v827 = vmul.f32 %v731, %v779
  %v828 = vmul.f32 %v396, %v780
  %v829 = vmul.f32 %v397, %v781
  %v830 = vmul.f32 %v398, %v782
  %v831 = vmul.f32 %v399, %v783
  %v832 = vmul.f32 %v400, %v784
  %v833 = vmul.f32 %v401, %v785
  %v834 = vmul.f32 %v402, %v786
  %v835 = vmul.f32 %v403, %v787
  %v836 = vmul.f32 %v404, %v788
  %v837 = vmul.f32 %v405, %v789
  %v838 = vmul.f32 %v406, %v790
  %v839 = vmul.f32 %v407, %v791
  %v840 = vmul.f32 %v408, %v792
  %v841 = vmul.f32 %v409, %v793
  %v842 = vmul.f32 %v410, %v794
  %v843 = vmul.f32 %v411, %v795
  %v844 = vmul.f32 %v412, %v796
  %v845 = vmul.f32 %v413, %v797
  %v846 = vmul.f32 %v414, %v798
  %v847 = vmul.f32 %v415, %v799
  %v848 = vmul.f32 %v416, %v800
  %v849 = vmul.f32 %v417, %v801
  %v850 = vmul.f32 %v418, %v802
  %v851 = vmul.f32 %v419, %v803
  %v852 = vmul.f32 %v420, %v804
  %v853 = vmul.f32 %v421, %v805
  %v854 = vmul.f32 %v422, %v806
  %v855 = vmul.f32 %v423, %v807
  %v856 = vmul.f32 %v424, %v808
  %v857 = vmul.f32 %v425, %v809
  %v858 = vmul.f32 %v426, %v810
  %v859 = vmul.f32 %v427, %v811
  %v860 = vmul.f32 %v428, %v812
  %v861 = vmul.f32 %v429, %v813
  %v862 = vmul.f32 %v430, %v814
  %v863 = vmul.f32 %v431, %v815
  %v864 = vmul.f32 %v432, %v816
  %v865 = vmul.f32 %v433, %v817
  %v866 = vmul.f32 %v434, %v818
  %v867 = vmul.f32 %v435, %v819
  %v868 = vmul.f32 %v436, %v820
  %v869 = vmul.f32 %v437, %v821
  %v870 = vmul.f32 %v438, %v822
  %v871 = vmul.f32 %v439, %v823
  %v872 = vmul.f32 %v440, %v824
  %v873 = vmul.f32 %v441, %v825
  %v874 = vmul.f32 %v442, %v826
  %v875 = vmul.f32 %v443, %v827
  %924 = vrot.lane.b32.xlu0 %v828, 1
  %v925 = vpop.permute.xlu0 %924
  %926 = vrot.lane.b32.xlu0 %v829, 1
  %v927 = vpop.permute.xlu0 %926
  %928 = vrot.lane.b32.xlu0 %v830, 1
  %v929 = vpop.permute.xlu0 %928
  %930 = vrot.lane.b32.xlu0 %v831, 1
  %v931 = vpop.permute.xlu0 %930
  %932 = vrot.lane.b32.xlu0 %v832, 1
  %v933 = vpop.permute.xlu0 %932
  %934 = vrot.lane.b32.xlu0 %v833, 1
  %v935 = vpop.permute.xlu0 %934
  %936 = vrot.lane.b32.xlu0 %v834, 1
  %v937 = vpop.permute.xlu0 %936
  %938 = vrot.lane.b32.xlu0 %v835, 1
  %v939 = vpop.permute.xlu0 %938
  %940 = vrot.lane.b32.xlu0 %v836, 1
  %v941 = vpop.permute.xlu0 %940
  %942 = vrot.lane.b32.xlu0 %v837, 1
  %v943 = vpop.permute.xlu0 %942
  %944 = vrot.lane.b32.xlu0 %v838, 1
  %v945 = vpop.permute.xlu0 %944
  %946 = vrot.lane.b32.xlu0 %v839, 1
  %v947 = vpop.permute.xlu0 %946
  %948 = vrot.lane.b32.xlu0 %v840, 1
  %v949 = vpop.permute.xlu0 %948
  %950 = vrot.lane.b32.xlu0 %v841, 1
  %v951 = vpop.permute.xlu0 %950
  %952 = vrot.lane.b32.xlu0 %v842, 1
  %v953 = vpop.permute.xlu0 %952
  %954 = vrot.lane.b32.xlu0 %v843, 1
  %v955 = vpop.permute.xlu0 %954
  %956 = vrot.lane.b32.xlu0 %v844, 1
  %v957 = vpop.permute.xlu0 %956
  %958 = vrot.lane.b32.xlu0 %v845, 1
  %v959 = vpop.permute.xlu0 %958
  %960 = vrot.lane.b32.xlu0 %v846, 1
  %v961 = vpop.permute.xlu0 %960
  %962 = vrot.lane.b32.xlu0 %v847, 1
  %v963 = vpop.permute.xlu0 %962
  %964 = vrot.lane.b32.xlu0 %v848, 1
  %v965 = vpop.permute.xlu0 %964
  %966 = vrot.lane.b32.xlu0 %v849, 1
  %v967 = vpop.permute.xlu0 %966
  %968 = vrot.lane.b32.xlu0 %v850, 1
  %v969 = vpop.permute.xlu0 %968
  %970 = vrot.lane.b32.xlu0 %v851, 1
  %v971 = vpop.permute.xlu0 %970
  %972 = vrot.lane.b32.xlu0 %v852, 1
  %v973 = vpop.permute.xlu0 %972
  %974 = vrot.lane.b32.xlu0 %v853, 1
  %v975 = vpop.permute.xlu0 %974
  %976 = vrot.lane.b32.xlu0 %v854, 1
  %v977 = vpop.permute.xlu0 %976
  %978 = vrot.lane.b32.xlu0 %v855, 1
  %v979 = vpop.permute.xlu0 %978
  %980 = vrot.lane.b32.xlu0 %v856, 1
  %v981 = vpop.permute.xlu0 %980
  %982 = vrot.lane.b32.xlu0 %v857, 1
  %v983 = vpop.permute.xlu0 %982
  %984 = vrot.lane.b32.xlu0 %v858, 1
  %v985 = vpop.permute.xlu0 %984
  %986 = vrot.lane.b32.xlu0 %v859, 1
  %v987 = vpop.permute.xlu0 %986
  %988 = vrot.lane.b32.xlu0 %v860, 1
  %v989 = vpop.permute.xlu0 %988
  %990 = vrot.lane.b32.xlu0 %v861, 1
  %v991 = vpop.permute.xlu0 %990
  %992 = vrot.lane.b32.xlu0 %v862, 1
  %v993 = vpop.permute.xlu0 %992
  %994 = vrot.lane.b32.xlu0 %v863, 1
  %v995 = vpop.permute.xlu0 %994
  %996 = vrot.lane.b32.xlu0 %v864, 1
  %v997 = vpop.permute.xlu0 %996
  %998 = vrot.lane.b32.xlu0 %v865, 1
  %v999 = vpop.permute.xlu0 %998
  %1000 = vrot.lane.b32.xlu0 %v866, 1
  %v1001 = vpop.permute.xlu0 %1000
  %1002 = vrot.lane.b32.xlu0 %v867, 1
  %v1003 = vpop.permute.xlu0 %1002
  %1004 = vrot.lane.b32.xlu0 %v868, 1
  %v1005 = vpop.permute.xlu0 %1004
  %1006 = vrot.lane.b32.xlu0 %v869, 1
  %v1007 = vpop.permute.xlu0 %1006
  %1008 = vrot.lane.b32.xlu0 %v870, 1
  %v1009 = vpop.permute.xlu0 %1008
  %1010 = vrot.lane.b32.xlu0 %v871, 1
  %v1011 = vpop.permute.xlu0 %1010
  %1012 = vrot.lane.b32.xlu0 %v872, 1
  %v1013 = vpop.permute.xlu0 %1012
  %1014 = vrot.lane.b32.xlu0 %v873, 1
  %v1015 = vpop.permute.xlu0 %1014
  %1016 = vrot.lane.b32.xlu0 %v874, 1
  %v1017 = vpop.permute.xlu0 %1016
  %1018 = vrot.lane.b32.xlu0 %v875, 1
  %v1019 = vpop.permute.xlu0 %1018
  %v1068 = vsub.f32 %v732, %v925
  %v1069 = vsub.f32 %v733, %v927
  %v1070 = vsub.f32 %v734, %v929
  %v1071 = vsub.f32 %v735, %v931
  %v1072 = vsub.f32 %v736, %v933
  %v1073 = vsub.f32 %v737, %v935
  %v1074 = vsub.f32 %v738, %v937
  %v1075 = vsub.f32 %v739, %v939
  %v1076 = vsub.f32 %v740, %v941
  %v1077 = vsub.f32 %v741, %v943
  %v1078 = vsub.f32 %v742, %v945
  %v1079 = vsub.f32 %v743, %v947
  %v1080 = vsub.f32 %v744, %v949
  %v1081 = vsub.f32 %v745, %v951
  %v1082 = vsub.f32 %v746, %v953
  %v1083 = vsub.f32 %v747, %v955
  %v1084 = vsub.f32 %v748, %v957
  %v1085 = vsub.f32 %v749, %v959
  %v1086 = vsub.f32 %v750, %v961
  %v1087 = vsub.f32 %v751, %v963
  %v1088 = vsub.f32 %v752, %v965
  %v1089 = vsub.f32 %v753, %v967
  %v1090 = vsub.f32 %v754, %v969
  %v1091 = vsub.f32 %v755, %v971
  %v1092 = vsub.f32 %v756, %v973
  %v1093 = vsub.f32 %v757, %v975
  %v1094 = vsub.f32 %v758, %v977
  %v1095 = vsub.f32 %v759, %v979
  %v1096 = vsub.f32 %v760, %v981
  %v1097 = vsub.f32 %v761, %v983
  %v1098 = vsub.f32 %v762, %v985
  %v1099 = vsub.f32 %v763, %v987
  %v1100 = vsub.f32 %v764, %v989
  %v1101 = vsub.f32 %v765, %v991
  %v1102 = vsub.f32 %v766, %v993
  %v1103 = vsub.f32 %v767, %v995
  %v1104 = vsub.f32 %v768, %v997
  %v1105 = vsub.f32 %v769, %v999
  %v1106 = vsub.f32 %v770, %v1001
  %v1107 = vsub.f32 %v771, %v1003
  %v1108 = vsub.f32 %v772, %v1005
  %v1109 = vsub.f32 %v773, %v1007
  %v1110 = vsub.f32 %v774, %v1009
  %v1111 = vsub.f32 %v775, %v1011
  %v1112 = vsub.f32 %v776, %v1013
  %v1113 = vsub.f32 %v777, %v1015
  %v1114 = vsub.f32 %v778, %v1017
  %v1115 = vsub.f32 %v779, %v1019
  %1117 = vset.pattern.permute.xlu0 0
  %1118 = vperm.xlu0 %1117, %v780
  %v1119 = vpop.permute.xlu0 %1118
  %1122 = vset.pattern.permute.xlu0 0
  %1123 = vperm.xlu0 %1122, %v781
  %v1124 = vpop.permute.xlu0 %1123
  %1127 = vset.pattern.permute.xlu0 0
  %1128 = vperm.xlu0 %1127, %v782
  %v1129 = vpop.permute.xlu0 %1128
  %1132 = vset.pattern.permute.xlu0 0
  %1133 = vperm.xlu0 %1132, %v783
  %v1134 = vpop.permute.xlu0 %1133
  %1137 = vset.pattern.permute.xlu0 0
  %1138 = vperm.xlu0 %1137, %v784
  %v1139 = vpop.permute.xlu0 %1138
  %1142 = vset.pattern.permute.xlu0 0
  %1143 = vperm.xlu0 %1142, %v785
  %v1144 = vpop.permute.xlu0 %1143
  %1147 = vset.pattern.permute.xlu0 0
  %1148 = vperm.xlu0 %1147, %v786
  %v1149 = vpop.permute.xlu0 %1148
  %1152 = vset.pattern.permute.xlu0 0
  %1153 = vperm.xlu0 %1152, %v787
  %v1154 = vpop.permute.xlu0 %1153
  %1157 = vset.pattern.permute.xlu0 0
  %1158 = vperm.xlu0 %1157, %v788
  %v1159 = vpop.permute.xlu0 %1158
  %1162 = vset.pattern.permute.xlu0 0
  %1163 = vperm.xlu0 %1162, %v789
  %v1164 = vpop.permute.xlu0 %1163
  %1167 = vset.pattern.permute.xlu0 0
  %1168 = vperm.xlu0 %1167, %v790
  %v1169 = vpop.permute.xlu0 %1168
  %1172 = vset.pattern.permute.xlu0 0
  %1173 = vperm.xlu0 %1172, %v791
  %v1174 = vpop.permute.xlu0 %1173
  %1177 = vset.pattern.permute.xlu0 0
  %1178 = vperm.xlu0 %1177, %v792
  %v1179 = vpop.permute.xlu0 %1178
  %1182 = vset.pattern.permute.xlu0 0
  %1183 = vperm.xlu0 %1182, %v793
  %v1184 = vpop.permute.xlu0 %1183
  %1187 = vset.pattern.permute.xlu0 0
  %1188 = vperm.xlu0 %1187, %v794
  %v1189 = vpop.permute.xlu0 %1188
  %1192 = vset.pattern.permute.xlu0 0
  %1193 = vperm.xlu0 %1192, %v795
  %v1194 = vpop.permute.xlu0 %1193
  %1197 = vset.pattern.permute.xlu0 0
  %1198 = vperm.xlu0 %1197, %v796
  %v1199 = vpop.permute.xlu0 %1198
  %1202 = vset.pattern.permute.xlu0 0
  %1203 = vperm.xlu0 %1202, %v797
  %v1204 = vpop.permute.xlu0 %1203
  %1207 = vset.pattern.permute.xlu0 0
  %1208 = vperm.xlu0 %1207, %v798
  %v1209 = vpop.permute.xlu0 %1208
  %1212 = vset.pattern.permute.xlu0 0
  %1213 = vperm.xlu0 %1212, %v799
  %v1214 = vpop.permute.xlu0 %1213
  %1217 = vset.pattern.permute.xlu0 0
  %1218 = vperm.xlu0 %1217, %v800
  %v1219 = vpop.permute.xlu0 %1218
  %1222 = vset.pattern.permute.xlu0 0
  %1223 = vperm.xlu0 %1222, %v801
  %v1224 = vpop.permute.xlu0 %1223
  %1227 = vset.pattern.permute.xlu0 0
  %1228 = vperm.xlu0 %1227, %v802
  %v1229 = vpop.permute.xlu0 %1228
  %1232 = vset.pattern.permute.xlu0 0
  %1233 = vperm.xlu0 %1232, %v803
  %v1234 = vpop.permute.xlu0 %1233
  %1237 = vset.pattern.permute.xlu0 0
  %1238 = vperm.xlu0 %1237, %v804
  %v1239 = vpop.permute.xlu0 %1238
  %1242 = vset.pattern.permute.xlu0 0
  %1243 = vperm.xlu0 %1242, %v805
  %v1244 = vpop.permute.xlu0 %1243
  %1247 = vset.pattern.permute.xlu0 0
  %1248 = vperm.xlu0 %1247, %v806
  %v1249 = vpop.permute.xlu0 %1248
  %1252 = vset.pattern.permute.xlu0 0
  %1253 = vperm.xlu0 %1252, %v807
  %v1254 = vpop.permute.xlu0 %1253
  %1257 = vset.pattern.permute.xlu0 0
  %1258 = vperm.xlu0 %1257, %v808
  %v1259 = vpop.permute.xlu0 %1258
  %1262 = vset.pattern.permute.xlu0 0
  %1263 = vperm.xlu0 %1262, %v809
  %v1264 = vpop.permute.xlu0 %1263
  %1267 = vset.pattern.permute.xlu0 0
  %1268 = vperm.xlu0 %1267, %v810
  %v1269 = vpop.permute.xlu0 %1268
  %1272 = vset.pattern.permute.xlu0 0
  %1273 = vperm.xlu0 %1272, %v811
  %v1274 = vpop.permute.xlu0 %1273
  %1277 = vset.pattern.permute.xlu0 0
  %1278 = vperm.xlu0 %1277, %v812
  %v1279 = vpop.permute.xlu0 %1278
  %1282 = vset.pattern.permute.xlu0 0
  %1283 = vperm.xlu0 %1282, %v813
  %v1284 = vpop.permute.xlu0 %1283
  %1287 = vset.pattern.permute.xlu0 0
  %1288 = vperm.xlu0 %1287, %v814
  %v1289 = vpop.permute.xlu0 %1288
  %1292 = vset.pattern.permute.xlu0 0
  %1293 = vperm.xlu0 %1292, %v815
  %v1294 = vpop.permute.xlu0 %1293
  %1297 = vset.pattern.permute.xlu0 0
  %1298 = vperm.xlu0 %1297, %v816
  %v1299 = vpop.permute.xlu0 %1298
  %1302 = vset.pattern.permute.xlu0 0
  %1303 = vperm.xlu0 %1302, %v817
  %v1304 = vpop.permute.xlu0 %1303
  %1307 = vset.pattern.permute.xlu0 0
  %1308 = vperm.xlu0 %1307, %v818
  %v1309 = vpop.permute.xlu0 %1308
  %1312 = vset.pattern.permute.xlu0 0
  %1313 = vperm.xlu0 %1312, %v819
  %v1314 = vpop.permute.xlu0 %1313
  %1317 = vset.pattern.permute.xlu0 0
  %1318 = vperm.xlu0 %1317, %v820
  %v1319 = vpop.permute.xlu0 %1318
  %1322 = vset.pattern.permute.xlu0 0
  %1323 = vperm.xlu0 %1322, %v821
  %v1324 = vpop.permute.xlu0 %1323
  %1327 = vset.pattern.permute.xlu0 0
  %1328 = vperm.xlu0 %1327, %v822
  %v1329 = vpop.permute.xlu0 %1328
  %1332 = vset.pattern.permute.xlu0 0
  %1333 = vperm.xlu0 %1332, %v823
  %v1334 = vpop.permute.xlu0 %1333
  %1337 = vset.pattern.permute.xlu0 0
  %1338 = vperm.xlu0 %1337, %v824
  %v1339 = vpop.permute.xlu0 %1338
  %1342 = vset.pattern.permute.xlu0 0
  %1343 = vperm.xlu0 %1342, %v825
  %v1344 = vpop.permute.xlu0 %1343
  %1347 = vset.pattern.permute.xlu0 0
  %1348 = vperm.xlu0 %1347, %v826
  %v1349 = vpop.permute.xlu0 %1348
  %1352 = vset.pattern.permute.xlu0 0
  %1353 = vperm.xlu0 %1352, %v827
  %v1354 = vpop.permute.xlu0 %1353
  %v1356 = vmul.f32 %v11, %v1119
  %v1357 = vmul.f32 %v12, %v1124
  %v1358 = vmul.f32 %v13, %v1129
  %v1359 = vmul.f32 %v14, %v1134
  %v1360 = vmul.f32 %v15, %v1139
  %v1361 = vmul.f32 %v16, %v1144
  %v1362 = vmul.f32 %v17, %v1149
  %v1363 = vmul.f32 %v18, %v1154
  %v1364 = vmul.f32 %v19, %v1159
  %v1365 = vmul.f32 %v20, %v1164
  %v1366 = vmul.f32 %v21, %v1169
  %v1367 = vmul.f32 %v22, %v1174
  %v1368 = vmul.f32 %v23, %v1179
  %v1369 = vmul.f32 %v24, %v1184
  %v1370 = vmul.f32 %v25, %v1189
  %v1371 = vmul.f32 %v26, %v1194
  %v1372 = vmul.f32 %v27, %v1199
  %v1373 = vmul.f32 %v28, %v1204
  %v1374 = vmul.f32 %v29, %v1209
  %v1375 = vmul.f32 %v30, %v1214
  %v1376 = vmul.f32 %v31, %v1219
  %v1377 = vmul.f32 %v32, %v1224
  %v1378 = vmul.f32 %v33, %v1229
  %v1379 = vmul.f32 %v34, %v1234
  %v1380 = vmul.f32 %v35, %v1239
  %v1381 = vmul.f32 %v36, %v1244
  %v1382 = vmul.f32 %v37, %v1249
  %v1383 = vmul.f32 %v38, %v1254
  %v1384 = vmul.f32 %v39, %v1259
  %v1385 = vmul.f32 %v40, %v1264
  %v1386 = vmul.f32 %v41, %v1269
  %v1387 = vmul.f32 %v42, %v1274
  %v1388 = vmul.f32 %v43, %v1279
  %v1389 = vmul.f32 %v44, %v1284
  %v1390 = vmul.f32 %v45, %v1289
  %v1391 = vmul.f32 %v46, %v1294
  %v1392 = vmul.f32 %v47, %v1299
  %v1393 = vmul.f32 %v48, %v1304
  %v1394 = vmul.f32 %v49, %v1309
  %v1395 = vmul.f32 %v50, %v1314
  %v1396 = vmul.f32 %v51, %v1319
  %v1397 = vmul.f32 %v52, %v1324
  %v1398 = vmul.f32 %v53, %v1329
  %v1399 = vmul.f32 %v54, %v1334
  %v1400 = vmul.f32 %v55, %v1339
  %v1401 = vmul.f32 %v56, %v1344
  %v1402 = vmul.f32 %v57, %v1349
  %v1403 = vmul.f32 %v58, %v1354
  %1405 = vset.pattern.permute.xlu0 1
  %1406 = vperm.xlu0 %1405, %v1068
  %v1407 = vpop.permute.xlu0 %1406
  %1410 = vset.pattern.permute.xlu0 1
  %1411 = vperm.xlu0 %1410, %v1069
  %v1412 = vpop.permute.xlu0 %1411
  %1415 = vset.pattern.permute.xlu0 1
  %1416 = vperm.xlu0 %1415, %v1070
  %v1417 = vpop.permute.xlu0 %1416
  %1420 = vset.pattern.permute.xlu0 1
  %1421 = vperm.xlu0 %1420, %v1071
  %v1422 = vpop.permute.xlu0 %1421
  %1425 = vset.pattern.permute.xlu0 1
  %1426 = vperm.xlu0 %1425, %v1072
  %v1427 = vpop.permute.xlu0 %1426
  %1430 = vset.pattern.permute.xlu0 1
  %1431 = vperm.xlu0 %1430, %v1073
  %v1432 = vpop.permute.xlu0 %1431
  %1435 = vset.pattern.permute.xlu0 1
  %1436 = vperm.xlu0 %1435, %v1074
  %v1437 = vpop.permute.xlu0 %1436
  %1440 = vset.pattern.permute.xlu0 1
  %1441 = vperm.xlu0 %1440, %v1075
  %v1442 = vpop.permute.xlu0 %1441
  %1445 = vset.pattern.permute.xlu0 1
  %1446 = vperm.xlu0 %1445, %v1076
  %v1447 = vpop.permute.xlu0 %1446
  %1450 = vset.pattern.permute.xlu0 1
  %1451 = vperm.xlu0 %1450, %v1077
  %v1452 = vpop.permute.xlu0 %1451
  %1455 = vset.pattern.permute.xlu0 1
  %1456 = vperm.xlu0 %1455, %v1078
  %v1457 = vpop.permute.xlu0 %1456
  %1460 = vset.pattern.permute.xlu0 1
  %1461 = vperm.xlu0 %1460, %v1079
  %v1462 = vpop.permute.xlu0 %1461
  %1465 = vset.pattern.permute.xlu0 1
  %1466 = vperm.xlu0 %1465, %v1080
  %v1467 = vpop.permute.xlu0 %1466
  %1470 = vset.pattern.permute.xlu0 1
  %1471 = vperm.xlu0 %1470, %v1081
  %v1472 = vpop.permute.xlu0 %1471
  %1475 = vset.pattern.permute.xlu0 1
  %1476 = vperm.xlu0 %1475, %v1082
  %v1477 = vpop.permute.xlu0 %1476
  %1480 = vset.pattern.permute.xlu0 1
  %1481 = vperm.xlu0 %1480, %v1083
  %v1482 = vpop.permute.xlu0 %1481
  %1485 = vset.pattern.permute.xlu0 1
  %1486 = vperm.xlu0 %1485, %v1084
  %v1487 = vpop.permute.xlu0 %1486
  %1490 = vset.pattern.permute.xlu0 1
  %1491 = vperm.xlu0 %1490, %v1085
  %v1492 = vpop.permute.xlu0 %1491
  %1495 = vset.pattern.permute.xlu0 1
  %1496 = vperm.xlu0 %1495, %v1086
  %v1497 = vpop.permute.xlu0 %1496
  %1500 = vset.pattern.permute.xlu0 1
  %1501 = vperm.xlu0 %1500, %v1087
  %v1502 = vpop.permute.xlu0 %1501
  %1505 = vset.pattern.permute.xlu0 1
  %1506 = vperm.xlu0 %1505, %v1088
  %v1507 = vpop.permute.xlu0 %1506
  %1510 = vset.pattern.permute.xlu0 1
  %1511 = vperm.xlu0 %1510, %v1089
  %v1512 = vpop.permute.xlu0 %1511
  %1515 = vset.pattern.permute.xlu0 1
  %1516 = vperm.xlu0 %1515, %v1090
  %v1517 = vpop.permute.xlu0 %1516
  %1520 = vset.pattern.permute.xlu0 1
  %1521 = vperm.xlu0 %1520, %v1091
  %v1522 = vpop.permute.xlu0 %1521
  %1525 = vset.pattern.permute.xlu0 1
  %1526 = vperm.xlu0 %1525, %v1092
  %v1527 = vpop.permute.xlu0 %1526
  %1530 = vset.pattern.permute.xlu0 1
  %1531 = vperm.xlu0 %1530, %v1093
  %v1532 = vpop.permute.xlu0 %1531
  %1535 = vset.pattern.permute.xlu0 1
  %1536 = vperm.xlu0 %1535, %v1094
  %v1537 = vpop.permute.xlu0 %1536
  %1540 = vset.pattern.permute.xlu0 1
  %1541 = vperm.xlu0 %1540, %v1095
  %v1542 = vpop.permute.xlu0 %1541
  %1545 = vset.pattern.permute.xlu0 1
  %1546 = vperm.xlu0 %1545, %v1096
  %v1547 = vpop.permute.xlu0 %1546
  %1550 = vset.pattern.permute.xlu0 1
  %1551 = vperm.xlu0 %1550, %v1097
  %v1552 = vpop.permute.xlu0 %1551
  %1555 = vset.pattern.permute.xlu0 1
  %1556 = vperm.xlu0 %1555, %v1098
  %v1557 = vpop.permute.xlu0 %1556
  %1560 = vset.pattern.permute.xlu0 1
  %1561 = vperm.xlu0 %1560, %v1099
  %v1562 = vpop.permute.xlu0 %1561
  %1565 = vset.pattern.permute.xlu0 1
  %1566 = vperm.xlu0 %1565, %v1100
  %v1567 = vpop.permute.xlu0 %1566
  %1570 = vset.pattern.permute.xlu0 1
  %1571 = vperm.xlu0 %1570, %v1101
  %v1572 = vpop.permute.xlu0 %1571
  %1575 = vset.pattern.permute.xlu0 1
  %1576 = vperm.xlu0 %1575, %v1102
  %v1577 = vpop.permute.xlu0 %1576
  %1580 = vset.pattern.permute.xlu0 1
  %1581 = vperm.xlu0 %1580, %v1103
  %v1582 = vpop.permute.xlu0 %1581
  %1585 = vset.pattern.permute.xlu0 1
  %1586 = vperm.xlu0 %1585, %v1104
  %v1587 = vpop.permute.xlu0 %1586
  %1590 = vset.pattern.permute.xlu0 1
  %1591 = vperm.xlu0 %1590, %v1105
  %v1592 = vpop.permute.xlu0 %1591
  %1595 = vset.pattern.permute.xlu0 1
  %1596 = vperm.xlu0 %1595, %v1106
  %v1597 = vpop.permute.xlu0 %1596
  %1600 = vset.pattern.permute.xlu0 1
  %1601 = vperm.xlu0 %1600, %v1107
  %v1602 = vpop.permute.xlu0 %1601
  %1605 = vset.pattern.permute.xlu0 1
  %1606 = vperm.xlu0 %1605, %v1108
  %v1607 = vpop.permute.xlu0 %1606
  %1610 = vset.pattern.permute.xlu0 1
  %1611 = vperm.xlu0 %1610, %v1109
  %v1612 = vpop.permute.xlu0 %1611
  %1615 = vset.pattern.permute.xlu0 1
  %1616 = vperm.xlu0 %1615, %v1110
  %v1617 = vpop.permute.xlu0 %1616
  %1620 = vset.pattern.permute.xlu0 1
  %1621 = vperm.xlu0 %1620, %v1111
  %v1622 = vpop.permute.xlu0 %1621
  %1625 = vset.pattern.permute.xlu0 1
  %1626 = vperm.xlu0 %1625, %v1112
  %v1627 = vpop.permute.xlu0 %1626
  %1630 = vset.pattern.permute.xlu0 1
  %1631 = vperm.xlu0 %1630, %v1113
  %v1632 = vpop.permute.xlu0 %1631
  %1635 = vset.pattern.permute.xlu0 1
  %1636 = vperm.xlu0 %1635, %v1114
  %v1637 = vpop.permute.xlu0 %1636
  %1640 = vset.pattern.permute.xlu0 1
  %1641 = vperm.xlu0 %1640, %v1115
  %v1642 = vpop.permute.xlu0 %1641
  %v1644 = vadd.f32 %v1356, %v1407
  %v1645 = vadd.f32 %v1357, %v1412
  %v1646 = vadd.f32 %v1358, %v1417
  %v1647 = vadd.f32 %v1359, %v1422
  %v1648 = vadd.f32 %v1360, %v1427
  %v1649 = vadd.f32 %v1361, %v1432
  %v1650 = vadd.f32 %v1362, %v1437
  %v1651 = vadd.f32 %v1363, %v1442
  %v1652 = vadd.f32 %v1364, %v1447
  %v1653 = vadd.f32 %v1365, %v1452
  %v1654 = vadd.f32 %v1366, %v1457
  %v1655 = vadd.f32 %v1367, %v1462
  %v1656 = vadd.f32 %v1368, %v1467
  %v1657 = vadd.f32 %v1369, %v1472
  %v1658 = vadd.f32 %v1370, %v1477
  %v1659 = vadd.f32 %v1371, %v1482
  %v1660 = vadd.f32 %v1372, %v1487
  %v1661 = vadd.f32 %v1373, %v1492
  %v1662 = vadd.f32 %v1374, %v1497
  %v1663 = vadd.f32 %v1375, %v1502
  %v1664 = vadd.f32 %v1376, %v1507
  %v1665 = vadd.f32 %v1377, %v1512
  %v1666 = vadd.f32 %v1378, %v1517
  %v1667 = vadd.f32 %v1379, %v1522
  %v1668 = vadd.f32 %v1380, %v1527
  %v1669 = vadd.f32 %v1381, %v1532
  %v1670 = vadd.f32 %v1382, %v1537
  %v1671 = vadd.f32 %v1383, %v1542
  %v1672 = vadd.f32 %v1384, %v1547
  %v1673 = vadd.f32 %v1385, %v1552
  %v1674 = vadd.f32 %v1386, %v1557
  %v1675 = vadd.f32 %v1387, %v1562
  %v1676 = vadd.f32 %v1388, %v1567
  %v1677 = vadd.f32 %v1389, %v1572
  %v1678 = vadd.f32 %v1390, %v1577
  %v1679 = vadd.f32 %v1391, %v1582
  %v1680 = vadd.f32 %v1392, %v1587
  %v1681 = vadd.f32 %v1393, %v1592
  %v1682 = vadd.f32 %v1394, %v1597
  %v1683 = vadd.f32 %v1395, %v1602
  %v1684 = vadd.f32 %v1396, %v1607
  %v1685 = vadd.f32 %v1397, %v1612
  %v1686 = vadd.f32 %v1398, %v1617
  %v1687 = vadd.f32 %v1399, %v1622
  %v1688 = vadd.f32 %v1400, %v1627
  %v1689 = vadd.f32 %v1401, %v1632
  %v1690 = vadd.f32 %v1402, %v1637
  %v1691 = vadd.f32 %v1403, %v1642
  %v1692 = vmax.f32 %v1644, 0.0
  %v1693 = vmax.f32 %v1645, 0.0
  %v1694 = vmax.f32 %v1646, 0.0
  %v1695 = vmax.f32 %v1647, 0.0
  %v1696 = vmax.f32 %v1648, 0.0
  %v1697 = vmax.f32 %v1649, 0.0
  %v1698 = vmax.f32 %v1650, 0.0
  %v1699 = vmax.f32 %v1651, 0.0
  %v1700 = vmax.f32 %v1652, 0.0
  %v1701 = vmax.f32 %v1653, 0.0
  %v1702 = vmax.f32 %v1654, 0.0
  %v1703 = vmax.f32 %v1655, 0.0
  %v1704 = vmax.f32 %v1656, 0.0
  %v1705 = vmax.f32 %v1657, 0.0
  %v1706 = vmax.f32 %v1658, 0.0
  %v1707 = vmax.f32 %v1659, 0.0
  %v1708 = vmax.f32 %v1660, 0.0
  %v1709 = vmax.f32 %v1661, 0.0
  %v1710 = vmax.f32 %v1662, 0.0
  %v1711 = vmax.f32 %v1663, 0.0
  %v1712 = vmax.f32 %v1664, 0.0
  %v1713 = vmax.f32 %v1665, 0.0
  %v1714 = vmax.f32 %v1666, 0.0
  %v1715 = vmax.f32 %v1667, 0.0
  %v1716 = vmax.f32 %v1668, 0.0
  %v1717 = vmax.f32 %v1669, 0.0
  %v1718 = vmax.f32 %v1670, 0.0
  %v1719 = vmax.f32 %v1671, 0.0
  %v1720 = vmax.f32 %v1672, 0.0
  %v1721 = vmax.f32 %v1673, 0.0
  %v1722 = vmax.f32 %v1674, 0.0
  %v1723 = vmax.f32 %v1675, 0.0
  %v1724 = vmax.f32 %v1676, 0.0
  %v1725 = vmax.f32 %v1677, 0.0
  %v1726 = vmax.f32 %v1678, 0.0
  %v1727 = vmax.f32 %v1679, 0.0
  %v1728 = vmax.f32 %v1680, 0.0
  %v1729 = vmax.f32 %v1681, 0.0
  %v1730 = vmax.f32 %v1682, 0.0
  %v1731 = vmax.f32 %v1683, 0.0
  %v1732 = vmax.f32 %v1684, 0.0
  %v1733 = vmax.f32 %v1685, 0.0
  %v1734 = vmax.f32 %v1686, 0.0
  %v1735 = vmax.f32 %v1687, 0.0
  %v1736 = vmax.f32 %v1688, 0.0
  %v1737 = vmax.f32 %v1689, 0.0
  %v1738 = vmax.f32 %v1690, 0.0
  %v1739 = vmax.f32 %v1691, 0.0
  %1740 = vst.msk [vmem:[%s2] sm:$0xff] %vm59, %v1692
  %1741 = vst.msk [vmem:[%s2 + $0x8] sm:$0xff] %vm59, %v1693
  %1742 = vst.msk [vmem:[%s2 + $0x10] sm:$0xff] %vm59, %v1694
  %1743 = vst.msk [vmem:[%s2 + $0x18] sm:$0xff] %vm59, %v1695
  %1744 = vst.msk [vmem:[%s2 + $0x20] sm:$0xff] %vm59, %v1696
  %1745 = vst.msk [vmem:[%s2 + $0x28] sm:$0xff] %vm59, %v1697
  %1746 = vst.msk [vmem:[%s2 + $0x30] sm:$0xff] %vm59, %v1698
  %1747 = vst.msk [vmem:[%s2 + $0x38] sm:$0xff] %vm59, %v1699
  %1748 = vst.msk [vmem:[%s2 + $0x40] sm:$0xff] %vm59, %v1700
  %1749 = vst.msk [vmem:[%s2 + $0x48] sm:$0xff] %vm59, %v1701
  %1750 = vst.msk [vmem:[%s2 + $0x50] sm:$0xff] %vm59, %v1702
  %1751 = vst.msk [vmem:[%s2 + $0x58] sm:$0xff] %vm59, %v1703
  %1752 = vst.msk [vmem:[%s2 + $0x60] sm:$0xff] %vm59, %v1704
  %1753 = vst.msk [vmem:[%s2 + $0x68] sm:$0xff] %vm59, %v1705
  %1754 = vst.msk [vmem:[%s2 + $0x70] sm:$0xff] %vm59, %v1706
  %1755 = vst.msk [vmem:[%s2 + $0x78] sm:$0xff] %vm59, %v1707
  %1756 = vst.msk [vmem:[%s2 + $0x80] sm:$0xff] %vm59, %v1708
  %1757 = vst.msk [vmem:[%s2 + $0x88] sm:$0xff] %vm59, %v1709
  %1758 = vst.msk [vmem:[%s2 + $0x90] sm:$0xff] %vm59, %v1710
  %1759 = vst.msk [vmem:[%s2 + $0x98] sm:$0xff] %vm59, %v1711
  %1760 = vst.msk [vmem:[%s2 + $0xa0] sm:$0xff] %vm59, %v1712
  %1761 = vst.msk [vmem:[%s2 + $0xa8] sm:$0xff] %vm59, %v1713
  %1762 = vst.msk [vmem:[%s2 + $0xb0] sm:$0xff] %vm59, %v1714
  %1763 = vst.msk [vmem:[%s2 + $0xb8] sm:$0xff] %vm59, %v1715
  %1764 = vst.msk [vmem:[%s2 + $0xc0] sm:$0xff] %vm59, %v1716
  %1765 = vst.msk [vmem:[%s2 + $0xc8] sm:$0xff] %vm59, %v1717
  %1766 = vst.msk [vmem:[%s2 + $0xd0] sm:$0xff] %vm59, %v1718
  %1767 = vst.msk [vmem:[%s2 + $0xd8] sm:$0xff] %vm59, %v1719
  %1768 = vst.msk [vmem:[%s2 + $0xe0] sm:$0xff] %vm59, %v1720
  %1769 = vst.msk [vmem:[%s2 + $0xe8] sm:$0xff] %vm59, %v1721
  %1770 = vst.msk [vmem:[%s2 + $0xf0] sm:$0xff] %vm59, %v1722
  %1771 = vst.msk [vmem:[%s2 + $0xf8] sm:$0xff] %vm59, %v1723
  %1772 = vst.msk [vmem:[%s2 + $0x100] sm:$0xff] %vm59, %v1724
  %1773 = vst.msk [vmem:[%s2 + $0x108] sm:$0xff] %vm59, %v1725
  %1774 = vst.msk [vmem:[%s2 + $0x110] sm:$0xff] %vm59, %v1726
  %1775 = vst.msk [vmem:[%s2 + $0x118] sm:$0xff] %vm59, %v1727
  %1776 = vst.msk [vmem:[%s2 + $0x120] sm:$0xff] %vm59, %v1728
  %1777 = vst.msk [vmem:[%s2 + $0x128] sm:$0xff] %vm59, %v1729
  %1778 = vst.msk [vmem:[%s2 + $0x130] sm:$0xff] %vm59, %v1730
  %1779 = vst.msk [vmem:[%s2 + $0x138] sm:$0xff] %vm59, %v1731
  %1780 = vst.msk [vmem:[%s2 + $0x140] sm:$0xff] %vm59, %v1732
  %1781 = vst.msk [vmem:[%s2 + $0x148] sm:$0xff] %vm59, %v1733
  %1782 = vst.msk [vmem:[%s2 + $0x150] sm:$0xff] %vm59, %v1734
  %1783 = vst.msk [vmem:[%s2 + $0x158] sm:$0xff] %vm59, %v1735
  %1784 = vst.msk [vmem:[%s2 + $0x160] sm:$0xff] %vm59, %v1736
  %1785 = vst.msk [vmem:[%s2 + $0x168] sm:$0xff] %vm59, %v1737
  %1786 = vst.msk [vmem:[%s2 + $0x170] sm:$0xff] %vm59, %v1738
  %1787 = vst.msk [vmem:[%s2 + $0x178] sm:$0xff] %vm59, %v1739
  // Predicated region
  $region10: #{tpu_custom_call.1} parent=0 // pred_check
    _
  $region11: #{tpu_custom_call.1} parent=0 // pred_check_branch
    %1789 = sbr.rel (0) target = $region13
  $region12: #{tpu_custom_call.1} parent=0 // pred_region
    _
  $region13: #{tpu_custom_call.1} parent=0 // pred_fallthru
    _
  // Predicated region
  $region14: #{tpu_custom_call.1} parent=0 // pred_check
    _
  $region15: #{tpu_custom_call.1} parent=0 // pred_check_branch
    %1791 = sbr.rel (0) target = $region17
  $region16: #{tpu_custom_call.1} parent=0 // pred_region
    _
  $region17: #{tpu_custom_call.1} parent=0 // pred_fallthru
    _

</llo_original>
